<compile_context>
chip_gen: v6e
topology: v6e:2x2x1
jax: 0.10.0
libtpu: 0.0.40
codegen_flags: <defaults>
</compile_context>

<pallas_src>
import jax
import jax.numpy as jnp
from jax.experimental import pallas as pl
from jax.experimental.pallas import tpu as pltpu

TILE_B = 256  # cap: multiple of 256 (v6e/v7x MXU rows) and 128 (v5e)


def policy_kernel(x_ref, w1_ref, b1_ref, w2_ref, b2_ref, w3_ref, b3_ref, o_ref):
    x = x_ref[...]  # bf16 tile (tile_b, feature_dim)

    # Linear(feature_dim, 128) + ReLU  (bf16 MXU inputs, f32 accumulation)
    h1 = jnp.dot(x, w1_ref[...], preferred_element_type=jnp.float32) + b1_ref[...]
    h1 = jnp.maximum(h1, 0.0).astype(jnp.bfloat16)

    # Linear(128, 64) + ReLU
    h2 = jnp.dot(h1, w2_ref[...], preferred_element_type=jnp.float32) + b2_ref[...]
    h2 = jnp.maximum(h2, 0.0).astype(jnp.bfloat16)

    # Linear(64, action_dim)
    logits = jnp.dot(h2, w3_ref[...], preferred_element_type=jnp.float32) + b3_ref[...]

    # Softmax(dim=-1), numerically stable, all in f32.
    m = jnp.max(logits, axis=-1, keepdims=True)
    e = jnp.exp(logits - m)
    probs = e * pl.reciprocal(jnp.sum(e, axis=-1, keepdims=True), approx=True)

    o_ref[...] = probs.astype(o_ref.dtype)


def _round_up(n, m):
    return ((n + m - 1) // m) * m


def policy_forward(x, params, *, tile_b=TILE_B):
    w1, b1, w2, b2, w3, b3 = params
    B, feature_dim = x.shape
    action_dim = w3.shape[1]

    # Adaptive tile: avoid padding tiny batches all the way to 256 rows, but keep
    # the sublane dim a multiple of 8 so the BlockSpec is layout-legal.
    tb = min(tile_b, max(8, _round_up(B, 8)))
    padded_B = pl.cdiv(B, tb) * tb
    if padded_B != B:
        x = jnp.pad(x, ((0, padded_B - B), (0, 0)))

    # Stream x / weights in bf16; biases stay f32 (added post f32 accumulation).
    x_bf16 = x.astype(jnp.bfloat16)
    w1b = w1.astype(jnp.bfloat16)
    w2b = w2.astype(jnp.bfloat16)
    w3b = w3.astype(jnp.bfloat16)

    grid = (padded_B // tb,)

    def resident(shape):
        # Full-array block, constant index_map -> loaded once, VMEM-resident.
        return pl.BlockSpec(shape, lambda i: (0, 0))

    out = pl.pallas_call(
        policy_kernel,
        out_shape=jax.ShapeDtypeStruct((padded_B, action_dim), jnp.float32),
        grid=grid,
        in_specs=[
            pl.BlockSpec((tb, feature_dim), lambda i: (i, 0)),  # x: streamed per tile
            resident(w1b.shape), resident(b1.shape),
            resident(w2b.shape), resident(b2.shape),
            resident(w3b.shape), resident(b3.shape),
        ],
        out_specs=pl.BlockSpec((tb, action_dim), lambda i: (i, 0)),
        compiler_params=pltpu.CompilerParams(
            dimension_semantics=("parallel",),
        ),
    )(x_bf16, w1b, b1, w2b, b2, w3b, b3)

    return out[:B]


def init_params(key, feature_dim, action_dim):
    k1, k2, k3 = jax.random.split(key, 3)

    # Deterministic synthetic init (uniform, PyTorch-Linear-style fan_in scaling).
    def lin(k, fan_in, fan_out):
        bound = 1.0 / jnp.sqrt(fan_in)
        kw, kb = jax.random.split(k)
        w = jax.random.uniform(kw, (fan_in, fan_out), jnp.float32, -bound, bound)
        b = jax.random.uniform(kb, (1, fan_out), jnp.float32, -bound, bound)
        return w, b

    w1, b1 = lin(k1, feature_dim, 128)
    w2, b2 = lin(k2, 128, 64)
    w3, b3 = lin(k3, 64, action_dim)
    return (w1, b1, w2, b2, w3, b3)


def policy_reference(x, params):
    # Pure-JAX f32 reference for correctness checking.
    w1, b1, w2, b2, w3, b3 = params
    h1 = jnp.maximum(x @ w1 + b1, 0.0)
    h2 = jnp.maximum(h1 @ w2 + b2, 0.0)
    logits = h2 @ w3 + b3
    return jax.nn.softmax(logits, axis=-1)


if __name__ == "__main__":
    feature_dim = 32
    action_dim = 4
    batch = 2

    key = jax.random.PRNGKey(0)
    kx, kp = jax.random.split(key)
    x = jax.random.normal(kx, (batch, feature_dim), jnp.float32)
    params = init_params(kp, feature_dim, action_dim)

    out = policy_forward(x, params)
    jax.block_until_ready(out)

    # Sanity: shape, rows are probability distributions, and matches f32 reference
    # within bf16-input tolerance.
    assert out.shape == (batch, action_dim)
    row_sums = jnp.sum(out, axis=-1)
    assert bool(jnp.all(jnp.abs(row_sums - 1.0) < 1e-3))
    ref = policy_reference(x, params)
    assert bool(jnp.all(jnp.abs(out - ref) < 5e-2))

    # Also exercise a multi-tile batch path (streams >1 grid step).
    xb = jax.random.normal(kx, (300, feature_dim), jnp.float32)
    outb = policy_forward(xb, params)
    jax.block_until_ready(outb)
    refb = policy_reference(xb, params)
    assert outb.shape == (300, action_dim)
    assert bool(jnp.all(jnp.abs(outb - refb) < 5e-2))

    print("KERNEL_OK")
</pallas_src>

<mosaic_0001>
module attributes {stable_mosaic.version = 11 : i64} {
  func.func @policy_kernel(%arg0: i32, %arg1: memref<8x32xbf16, #tpu.memory_space<vmem>>, %arg2: memref<32x128xbf16, #tpu.memory_space<vmem>>, %arg3: memref<1x128xf32, #tpu.memory_space<vmem>>, %arg4: memref<128x64xbf16, #tpu.memory_space<vmem>>, %arg5: memref<1x64xf32, #tpu.memory_space<vmem>>, %arg6: memref<64x4xbf16, #tpu.memory_space<vmem>>, %arg7: memref<1x4xf32, #tpu.memory_space<vmem>>, %arg8: memref<8x4xf32, #tpu.memory_space<vmem>>) attributes {dimension_semantics = [#tpu.dimension_semantics<parallel>], iteration_bounds = array<i64: 1>, scalar_prefetch = 0 : i64, scratch_operands = 0 : i64, tpu.core_type = #tpu.core_type<tc>, window_params = [{transform_indices = @transform_0, window_bounds = array<i64: 8, 32>}, {pipeline_mode = #tpu.pipeline_mode<synchronous>, transform_indices = @transform_1, window_bounds = array<i64: 32, 128>}, {pipeline_mode = #tpu.pipeline_mode<synchronous>, transform_indices = @transform_2, window_bounds = array<i64: 1, 128>}, {pipeline_mode = #tpu.pipeline_mode<synchronous>, transform_indices = @transform_3, window_bounds = array<i64: 128, 64>}, {pipeline_mode = #tpu.pipeline_mode<synchronous>, transform_indices = @transform_4, window_bounds = array<i64: 1, 64>}, {pipeline_mode = #tpu.pipeline_mode<synchronous>, transform_indices = @transform_5, window_bounds = array<i64: 64, 4>}, {pipeline_mode = #tpu.pipeline_mode<synchronous>, transform_indices = @transform_6, window_bounds = array<i64: 1, 4>}, {transform_indices = @transform_7, window_bounds = array<i64: 8, 4>}]} {
    %c0 = arith.constant 0 : index
    %c0_0 = arith.constant 0 : index
    %0 = vector.load %arg1[%c0, %c0_0] : memref<8x32xbf16, #tpu.memory_space<vmem>>, vector<8x32xbf16>
    %c0_1 = arith.constant 0 : index
    %c0_2 = arith.constant 0 : index
    %1 = vector.load %arg2[%c0_1, %c0_2] : memref<32x128xbf16, #tpu.memory_space<vmem>>, vector<32x128xbf16>
    %cst = arith.constant dense<0.000000e+00> : vector<8x128xf32>
    %2 = tpu.matmul %0, %1, %cst {dimension_numbers = #tpu.dot_dimension_numbers<[1], [0], [0], [1], [0, 0, 1, 1], [], []>} : vector<8x32xbf16>, vector<32x128xbf16>, vector<8x128xf32> -> vector<8x128xf32>
    %c0_3 = arith.constant 0 : index
    %c0_4 = arith.constant 0 : index
    %3 = vector.load %arg3[%c0_3, %c0_4] : memref<1x128xf32, #tpu.memory_space<vmem>>, vector<1x128xf32>
    %4 = vector.broadcast %3 : vector<1x128xf32> to vector<8x128xf32>
    %5 = arith.addf %2, %4 : vector<8x128xf32>
    %cst_5 = arith.constant 0.000000e+00 : f32
    %6 = vector.broadcast %cst_5 : f32 to vector<8x128xf32>
    %7 = arith.maximumf %5, %6 : vector<8x128xf32>
    %8 = arith.truncf %7 : vector<8x128xf32> to vector<8x128xbf16>
    %c0_6 = arith.constant 0 : index
    %c0_7 = arith.constant 0 : index
    %9 = vector.load %arg4[%c0_6, %c0_7] : memref<128x64xbf16, #tpu.memory_space<vmem>>, vector<128x64xbf16>
    %cst_8 = arith.constant dense<0.000000e+00> : vector<8x64xf32>
    %10 = tpu.matmul %8, %9, %cst_8 {dimension_numbers = #tpu.dot_dimension_numbers<[1], [0], [0], [1], [0, 0, 1, 1], [], []>} : vector<8x128xbf16>, vector<128x64xbf16>, vector<8x64xf32> -> vector<8x64xf32>
    %c0_9 = arith.constant 0 : index
    %c0_10 = arith.constant 0 : index
    %11 = vector.load %arg5[%c0_9, %c0_10] : memref<1x64xf32, #tpu.memory_space<vmem>>, vector<1x64xf32>
    %12 = vector.broadcast %11 : vector<1x64xf32> to vector<8x64xf32>
    %13 = arith.addf %10, %12 : vector<8x64xf32>
    %cst_11 = arith.constant 0.000000e+00 : f32
    %14 = vector.broadcast %cst_11 : f32 to vector<8x64xf32>
    %15 = arith.maximumf %13, %14 : vector<8x64xf32>
    %16 = arith.truncf %15 : vector<8x64xf32> to vector<8x64xbf16>
    %c0_12 = arith.constant 0 : index
    %c0_13 = arith.constant 0 : index
    %17 = vector.load %arg6[%c0_12, %c0_13] : memref<64x4xbf16, #tpu.memory_space<vmem>>, vector<64x4xbf16>
    %cst_14 = arith.constant dense<0.000000e+00> : vector<8x4xf32>
    %18 = tpu.matmul %16, %17, %cst_14 {dimension_numbers = #tpu.dot_dimension_numbers<[1], [0], [0], [1], [0, 0, 1, 1], [], []>} : vector<8x64xbf16>, vector<64x4xbf16>, vector<8x4xf32> -> vector<8x4xf32>
    %c0_15 = arith.constant 0 : index
    %c0_16 = arith.constant 0 : index
    %19 = vector.load %arg7[%c0_15, %c0_16] : memref<1x4xf32, #tpu.memory_space<vmem>>, vector<1x4xf32>
    %20 = vector.broadcast %19 : vector<1x4xf32> to vector<8x4xf32>
    %21 = arith.addf %18, %20 : vector<8x4xf32>
    %cst_17 = arith.constant dense<0xFF800000> : vector<8xf32>
    %22 = vector.multi_reduction <maximumf>, %21, %cst_17 [1] : vector<8x4xf32> to vector<8xf32>
    %23 = vector.shape_cast %22 : vector<8xf32> to vector<8x1xf32>
    %24 = vector.broadcast %23 : vector<8x1xf32> to vector<8x4xf32>
    %25 = arith.subf %21, %24 : vector<8x4xf32>
    %26 = math.exp %25 : vector<8x4xf32>
    %cst_18 = arith.constant dense<0.000000e+00> : vector<8xf32>
    %27 = vector.multi_reduction <add>, %26, %cst_18 [1] : vector<8x4xf32> to vector<8xf32>
    %28 = vector.shape_cast %27 : vector<8xf32> to vector<8x1xf32>
    %29 = tpu.reciprocal %28 {approx = true} : vector<8x1xf32> -> vector<8x1xf32>
    %30 = vector.broadcast %29 : vector<8x1xf32> to vector<8x4xf32>
    %31 = arith.mulf %26, %30 : vector<8x4xf32>
    %c0_19 = arith.constant 0 : index
    %c0_20 = arith.constant 0 : index
    %32 = vector.load %arg8[%c0_19, %c0_20] : memref<8x4xf32, #tpu.memory_space<vmem>>, vector<8x4xf32>
    tpu.vector_store %arg8[%c0_19, %c0_20], %31 {strides = array<i32>} : memref<8x4xf32, #tpu.memory_space<vmem>>, vector<8x4xf32>,
    return
  }
  func.func @transform_0(%arg0: i32) -> (i32, i32) {
    %c0_i32 = arith.constant 0 : i32
    %c0_i32_0 = arith.constant 0 : i32
    return %arg0, %c0_i32 : i32, i32
  }
  func.func @transform_1(%arg0: i32) -> (i32, i32) {
    %c0_i32 = arith.constant 0 : i32
    %c0_i32_0 = arith.constant 0 : i32
    %c0_i32_1 = arith.constant 0 : i32
    return %c0_i32, %c0_i32_0 : i32, i32
  }
  func.func @transform_2(%arg0: i32) -> (i32, i32) {
    %c0_i32 = arith.constant 0 : i32
    %c0_i32_0 = arith.constant 0 : i32
    %c0_i32_1 = arith.constant 0 : i32
    return %c0_i32, %c0_i32_0 : i32, i32
  }
  func.func @transform_3(%arg0: i32) -> (i32, i32) {
    %c0_i32 = arith.constant 0 : i32
    %c0_i32_0 = arith.constant 0 : i32
    %c0_i32_1 = arith.constant 0 : i32
    return %c0_i32, %c0_i32_0 : i32, i32
  }
  func.func @transform_4(%arg0: i32) -> (i32, i32) {
    %c0_i32 = arith.constant 0 : i32
    %c0_i32_0 = arith.constant 0 : i32
    %c0_i32_1 = arith.constant 0 : i32
    return %c0_i32, %c0_i32_0 : i32, i32
  }
  func.func @transform_5(%arg0: i32) -> (i32, i32) {
    %c0_i32 = arith.constant 0 : i32
    %c0_i32_0 = arith.constant 0 : i32
    %c0_i32_1 = arith.constant 0 : i32
    return %c0_i32, %c0_i32_0 : i32, i32
  }
  func.func @transform_6(%arg0: i32) -> (i32, i32) {
    %c0_i32 = arith.constant 0 : i32
    %c0_i32_0 = arith.constant 0 : i32
    %c0_i32_1 = arith.constant 0 : i32
    return %c0_i32, %c0_i32_0 : i32, i32
  }
  func.func @transform_7(%arg0: i32) -> (i32, i32) {
    %c0_i32 = arith.constant 0 : i32
    %c0_i32_0 = arith.constant 0 : i32
    return %arg0, %c0_i32 : i32, i32
  }
}

</mosaic_0001>

<llo_original>
// kernel: tpu_custom_call.1
$region0: #{tpu_custom_call.1}
  #allocation0 [shape = 'u32[]', space=smem, size = 0x4, offset = 0x4, fixed_abs, tag = 'smem constant byte address 0x4 - core index']
  #allocation1 [shape = 'u32[144,128]{1,0:T(1,128)}', space=vmem, size = 0x12000, scoped, tag = 'internal scratch']
  %s0 = inlined_call_operand.vmem [shape: bf16[8,32], index: 0, kind: input, shape index: {}]
  %s1 = inlined_call_operand.vmem [shape: bf16[32,128], index: 1, kind: input, shape index: {}]
  %s2 = inlined_call_operand.vmem [shape: f32[1,128], index: 2, kind: input, shape index: {}]
  %s3 = inlined_call_operand.vmem [shape: bf16[128,64], index: 3, kind: input, shape index: {}]
  %s4 = inlined_call_operand.vmem [shape: f32[1,64], index: 4, kind: input, shape index: {}]
  %s5 = inlined_call_operand.vmem [shape: bf16[64,4], index: 5, kind: input, shape index: {}]
  %s6 = inlined_call_operand.vmem [shape: f32[1,4], index: 6, kind: input, shape index: {}]
  %s7 = inlined_call_operand.vmem [shape: f32[8,4], index: 7, kind: output, shape index: {}]
  %s8 = sld [smem:[#allocation0]]
  $region38: #{tpu_custom_call.1} parent=0
    _
  %s10 = ssub.s32 1, %s8
  %s11 = scalar_select 0, %s10, %s8
  // Predicated region
  $region2: #{tpu_custom_call.1} parent=0 // pred_check
    _
  $region3: #{tpu_custom_call.1} parent=0 // pred_check_branch
    %13 = sbr.rel (0) target = $region5
  $region4: #{tpu_custom_call.1} parent=0 // pred_region
    _
  $region5: #{tpu_custom_call.1} parent=0 // pred_fallthru
    _
  // Predicated region
  $region6: #{tpu_custom_call.1} parent=0 // pred_check
    _
  $region7: #{tpu_custom_call.1} parent=0 // pred_check_branch
    %15 = sbr.rel (0) target = $region9
  $region8: #{tpu_custom_call.1} parent=0 // pred_region
    _
  $region9: #{tpu_custom_call.1} parent=0 // pred_fallthru
    _
  // Predicated region
  $region10: #{tpu_custom_call.1} parent=0 // pred_check
    _
  $region11: #{tpu_custom_call.1} parent=0 // pred_check_branch
    %17 = sbr.rel (0) target = $region13
  $region12: #{tpu_custom_call.1} parent=0 // pred_region
    _
  $region13: #{tpu_custom_call.1} parent=0 // pred_fallthru
    _
  // Predicated region
  $region14: #{tpu_custom_call.1} parent=0 // pred_check
    _
  $region15: #{tpu_custom_call.1} parent=0 // pred_check_branch
    %19 = sbr.rel (0) target = $region17
  $region16: #{tpu_custom_call.1} parent=0 // pred_region
    _
  $region17: #{tpu_custom_call.1} parent=0 // pred_fallthru
    _
  // Predicated region
  $region18: #{tpu_custom_call.1} parent=0 // pred_check
    _
  $region19: #{tpu_custom_call.1} parent=0 // pred_check_branch
    %21 = sbr.rel (0) target = $region21
  $region20: #{tpu_custom_call.1} parent=0 // pred_region
    _
  $region21: #{tpu_custom_call.1} parent=0 // pred_fallthru
    _
  // Predicated region
  $region22: #{tpu_custom_call.1} parent=0 // pred_check
    _
  $region23: #{tpu_custom_call.1} parent=0 // pred_check_branch
    %23 = sbr.rel (0) target = $region25
  $region24: #{tpu_custom_call.1} parent=0 // pred_region
    _
  $region25: #{tpu_custom_call.1} parent=0 // pred_fallthru
    _
  // Predicated region
  $region26: #{tpu_custom_call.1} parent=0 // pred_check
    _
  $region27: #{tpu_custom_call.1} parent=0 // pred_check_branch
    %25 = sbr.rel (0) target = $region29
  $region28: #{tpu_custom_call.1} parent=0 // pred_region
    _
  $region29: #{tpu_custom_call.1} parent=0 // pred_fallthru
    _
  %v27 = vld [vmem:[%s0] sm:$0xf]
  %v28 = vld [vmem:[%s1] sm:$0xf]
  %v29 = vld [vmem:[%s1 + $0x4] sm:$0xf]
  %v30 = vld [vmem:[%s1 + $0x8] sm:$0xf]
  %v31 = vld [vmem:[%s1 + $0xc] sm:$0xf]
  %v32 = vld [vmem:[%s2] sm:$0x1]
  %v34 = vlaneseq
  %v35 = vshrl.u32 %v34, 7
  %v36 = vsub.s32 0, %v35
  %v37 = vrot.slane %v32, %v36
  %v43 = vunpack.c.l.b16 %v28
  %v44 = vunpack.c.l.b16 %v29
  %v45 = vunpack.c.l.b16 %v30
  %v46 = vunpack.c.l.b16 %v31
  %v47 = vpack.c.b16 %v44, %v43
  %v48 = vpack.c.b16 %v46, %v45
  %vm51 = vcmask 261120
  %v53 = vsel %vm51, %v27, 0
  %55 = vmatprep.subr.bf16.mxu0 0
  %56 = vmatpush1.bf16.msra.mxu0 0
  %57 = vmatprep.subr.bf16.mxu0 0
  %58 = vmatpush1.bf16.msra.mxu0 0
  %59 = vmatprep.subr.bf16.mxu0 0
  %60 = vmatpush1.bf16.msra.mxu0 0
  %61 = vmatprep.subr.bf16.mxu0 0
  %62 = vmatpush1.bf16.msra.mxu0 0
  %63 = vmatprep.subr.bf16.mxu0 0
  %64 = vmatpush1.bf16.msra.mxu0 0
  %65 = vmatprep.subr.bf16.mxu0 0
  %66 = vmatpush1.bf16.msra.mxu0 0
  %67 = vmatprep.subr.bf16.mxu0 0
  %68 = vmatpush1.bf16.msra.mxu0 %v48
  %69 = vmatprep.subr.bf16.mxu0 0
  %70 = vmatpush1.bf16.msra.mxu0 %v47
  %71 = vmatprep.subr.bf16.mxu0 0
  %72 = vmatpush2.bf16.msra.mxu0 0
  %73 = vmatprep.subr.bf16.mxu0 0
  %74 = vmatpush2.bf16.msra.mxu0 0
  %75 = vmatprep.subr.bf16.mxu0 0
  %76 = vmatpush2.bf16.msra.mxu0 0
  %77 = vmatprep.subr.bf16.mxu0 0
  %78 = vmatpush2.bf16.msra.mxu0 0
  %79 = vmatprep.subr.bf16.mxu0 0
  %80 = vmatpush2.bf16.msra.mxu0 0
  %81 = vmatprep.subr.bf16.mxu0 0
  %82 = vmatpush2.bf16.msra.mxu0 0
  %83 = vmatprep.subr.bf16.mxu0 0
  %84 = vmatpush2.bf16.msra.mxu0 0
  %85 = vmatprep.subr.bf16.mxu0 0
  %86 = vmatpush2.bf16.msra.mxu0 0
  %87 = vmatprep.mubr.bf16.mxu0 0
  %88 = vmatmul.mubr.bf16.gmra.mxu0 %v53
  %v89 = vpop.f32.mrf.mxu0
  %v90 = vadd.f32 %v37, %v89
  %v91 = vpop.f32.mrf.mxu0
  %v92 = vpop.f32.mrf.mxu0
  %v93 = vpop.f32.mrf.mxu0
  %94 = vdwg.mxu0
  %v95 = vmax.f32 %v90, 0.0
  %v96 = vpack.c.bf16 %v95, %v95
  %v97 = vld [vmem:[%s3] sm:$0xf]
  %v98 = vld [vmem:[%s3 + $0x4] sm:$0xf]
  %v99 = vld [vmem:[%s3 + $0x8] sm:$0xf]
  %v100 = vld [vmem:[%s3 + $0xc] sm:$0xf]
  %v101 = vld [vmem:[%s3 + $0x10] sm:$0xf]
  %v102 = vld [vmem:[%s3 + $0x14] sm:$0xf]
  %v103 = vld [vmem:[%s3 + $0x18] sm:$0xf]
  %v104 = vld [vmem:[%s3 + $0x1c] sm:$0xf]
  %v105 = vld [vmem:[%s3 + $0x20] sm:$0xf]
  %v106 = vld [vmem:[%s3 + $0x24] sm:$0xf]
  %v107 = vld [vmem:[%s3 + $0x28] sm:$0xf]
  %v108 = vld [vmem:[%s3 + $0x2c] sm:$0xf]
  %v109 = vld [vmem:[%s3 + $0x30] sm:$0xf]
  %v110 = vld [vmem:[%s3 + $0x34] sm:$0xf]
  %v111 = vld [vmem:[%s3 + $0x38] sm:$0xf]
  %v112 = vld [vmem:[%s3 + $0x3c] sm:$0xf]
  %v113 = vld [vmem:[%s4] sm:$0x1]
  %v115 = vlaneseq
  %v116 = vshrl.u32 %v115, 7
  %v117 = vsub.s32 0, %v116
  %v118 = vrot.slane %v113, %v117
  %v136 = vunpack.c.l.b16 %v97
  %v137 = vunpack.c.l.b16 %v98
  %v138 = vunpack.c.l.b16 %v99
  %v139 = vunpack.c.l.b16 %v100
  %v140 = vunpack.c.l.b16 %v101
  %v141 = vunpack.c.l.b16 %v102
  %v142 = vunpack.c.l.b16 %v103
  %v143 = vunpack.c.l.b16 %v104
  %v144 = vunpack.c.l.b16 %v105
  %v145 = vunpack.c.l.b16 %v106
  %v146 = vunpack.c.l.b16 %v107
  %v147 = vunpack.c.l.b16 %v108
  %v148 = vunpack.c.l.b16 %v109
  %v149 = vunpack.c.l.b16 %v110
  %v150 = vunpack.c.l.b16 %v111
  %v151 = vunpack.c.l.b16 %v112
  %v152 = vpack.c.b16 %v137, %v136
  %v153 = vpack.c.b16 %v139, %v138
  %v154 = vpack.c.b16 %v141, %v140
  %v155 = vpack.c.b16 %v143, %v142
  %v156 = vpack.c.b16 %v145, %v144
  %v157 = vpack.c.b16 %v147, %v146
  %v158 = vpack.c.b16 %v149, %v148
  %v159 = vpack.c.b16 %v151, %v150
  %168 = vmatprep.subr.bf16.mxu0 0
  %169 = vmatpush1.bf16.msra.mxu0 %v159
  %170 = vmatprep.subr.bf16.mxu0 0
  %171 = vmatpush1.bf16.msra.mxu0 %v158
  %172 = vmatprep.subr.bf16.mxu0 0
  %173 = vmatpush1.bf16.msra.mxu0 %v157
  %174 = vmatprep.subr.bf16.mxu0 0
  %175 = vmatpush1.bf16.msra.mxu0 %v156
  %176 = vmatprep.subr.bf16.mxu0 0
  %177 = vmatpush1.bf16.msra.mxu0 %v155
  %178 = vmatprep.subr.bf16.mxu0 0
  %179 = vmatpush1.bf16.msra.mxu0 %v154
  %180 = vmatprep.subr.bf16.mxu0 0
  %181 = vmatpush1.bf16.msra.mxu0 %v153
  %182 = vmatprep.subr.bf16.mxu0 0
  %183 = vmatpush1.bf16.msra.mxu0 %v152
  %184 = vmatprep.subr.bf16.mxu0 0
  %185 = vmatpush2.bf16.msra.mxu0 0
  %186 = vmatprep.subr.bf16.mxu0 0
  %187 = vmatpush2.bf16.msra.mxu0 0
  %188 = vmatprep.subr.bf16.mxu0 0
  %189 = vmatpush2.bf16.msra.mxu0 0
  %190 = vmatprep.subr.bf16.mxu0 0
  %191 = vmatpush2.bf16.msra.mxu0 0
  %192 = vmatprep.subr.bf16.mxu0 0
  %193 = vmatpush2.bf16.msra.mxu0 0
  %194 = vmatprep.subr.bf16.mxu0 0
  %195 = vmatpush2.bf16.msra.mxu0 0
  %196 = vmatprep.subr.bf16.mxu0 0
  %197 = vmatpush2.bf16.msra.mxu0 0
  %198 = vmatprep.subr.bf16.mxu0 0
  %199 = vmatpush2.bf16.msra.mxu0 0
  %200 = vmatprep.mubr.bf16.mxu0 0
  %201 = vmatmul.mubr.bf16.gmra.mxu0 %v96
  %v202 = vpop.f32.mrf.mxu0
  %v203 = vadd.f32 %v118, %v202
  %v204 = vpop.f32.mrf.mxu0
  %v205 = vpop.f32.mrf.mxu0
  %v206 = vpop.f32.mrf.mxu0
  %207 = vdwg.mxu0
  %v208 = vmax.f32 %v203, 0.0
  %v209 = vpack.c.bf16 %v208, %v208
  %v210 = vld [vmem:[%s5] sm:$0xf]
  %v211 = vld [vmem:[%s5 + $0x4] sm:$0xf]
  %v212 = vld [vmem:[%s5 + $0x8] sm:$0xf]
  %v213 = vld [vmem:[%s5 + $0xc] sm:$0xf]
  %v214 = vld [vmem:[%s5 + $0x10] sm:$0xf]
  %v215 = vld [vmem:[%s5 + $0x14] sm:$0xf]
  %v216 = vld [vmem:[%s5 + $0x18] sm:$0xf]
  %v217 = vld [vmem:[%s5 + $0x1c] sm:$0xf]
  %v218 = vld [vmem:[%s6] sm:$0x1]
  %v220 = vlaneseq
  %v221 = vshrl.u32 %v220, 7
  %v222 = vsub.s32 0, %v221
  %v223 = vrot.slane %v218, %v222
  %v233 = vunpack.c.l.b16 %v210
  %v234 = vunpack.c.l.b16 %v211
  %v235 = vunpack.c.l.b16 %v212
  %v236 = vunpack.c.l.b16 %v213
  %v237 = vunpack.c.l.b16 %v214
  %v238 = vunpack.c.l.b16 %v215
  %v239 = vunpack.c.l.b16 %v216
  %v240 = vunpack.c.l.b16 %v217
  %v241 = vpack.c.b16 %v234, %v233
  %v242 = vpack.c.b16 %v236, %v235
  %v243 = vpack.c.b16 %v238, %v237
  %v244 = vpack.c.b16 %v240, %v239
  %vm249 = vcmask 523264
  %v251 = vsel %vm249, %v209, 0
  %253 = vmatprep.subr.bf16.mxu0 0
  %254 = vmatpush1.bf16.msra.mxu0 0
  %255 = vmatprep.subr.bf16.mxu0 0
  %256 = vmatpush1.bf16.msra.mxu0 0
  %257 = vmatprep.subr.bf16.mxu0 0
  %258 = vmatpush1.bf16.msra.mxu0 0
  %259 = vmatprep.subr.bf16.mxu0 0
  %260 = vmatpush1.bf16.msra.mxu0 0
  %261 = vmatprep.subr.bf16.mxu0 0
  %262 = vmatpush1.bf16.msra.mxu0 %v244
  %263 = vmatprep.subr.bf16.mxu0 0
  %264 = vmatpush1.bf16.msra.mxu0 %v243
  %265 = vmatprep.subr.bf16.mxu0 0
  %266 = vmatpush1.bf16.msra.mxu0 %v242
  %267 = vmatprep.subr.bf16.mxu0 0
  %268 = vmatpush1.bf16.msra.mxu0 %v241
  %269 = vmatprep.subr.bf16.mxu0 0
  %270 = vmatpush2.bf16.msra.mxu0 0
  %271 = vmatprep.subr.bf16.mxu0 0
  %272 = vmatpush2.bf16.msra.mxu0 0
  %273 = vmatprep.subr.bf16.mxu0 0
  %274 = vmatpush2.bf16.msra.mxu0 0
  %275 = vmatprep.subr.bf16.mxu0 0
  %276 = vmatpush2.bf16.msra.mxu0 0
  %277 = vmatprep.subr.bf16.mxu0 0
  %278 = vmatpush2.bf16.msra.mxu0 0
  %279 = vmatprep.subr.bf16.mxu0 0
  %280 = vmatpush2.bf16.msra.mxu0 0
  %281 = vmatprep.subr.bf16.mxu0 0
  %282 = vmatpush2.bf16.msra.mxu0 0
  %283 = vmatprep.subr.bf16.mxu0 0
  %284 = vmatpush2.bf16.msra.mxu0 0
  %285 = vmatprep.mubr.bf16.mxu0 0
  %286 = vmatmul.mubr.bf16.gmra.mxu0 %v251
  %v287 = vpop.f32.mrf.mxu0
  %v288 = vadd.f32 %v223, %v287
  %v289 = vpop.f32.mrf.mxu0
  %v290 = vpop.f32.mrf.mxu0
  %v291 = vpop.f32.mrf.mxu0
  %292 = vdwg.mxu0
  %vm293 = vcmask 31744
  %v294 = vsel %vm293, %v288, -inf
  %295 = vmax.xlane.f32.xlu0 %v294
  %v296 = vpop.xlane.xlu0 %295
  %v297 = vsub.f32 %v288, %v296
  %v298 = vmul.f32 %v297, 1.442695
  %v299 = vpow.pop %v298
  %v300 = vsel %vm293, %v299, 0.0
  %301 = vadd.xlane.f32.xlu0 %v300
  %v302 = vpop.xlane.xlu0 %301
  %v303 = vrcp.pop %v302
  %v304 = vmul.f32 %v299, %v303
  %305 = vst.msk [vmem:[%s7] sm:$0xff] %vm293, %v304
  // Predicated region
  $region30: #{tpu_custom_call.1} parent=0 // pred_check
    _
  $region31: #{tpu_custom_call.1} parent=0 // pred_check_branch
    %307 = sbr.rel (0) target = $region33
  $region32: #{tpu_custom_call.1} parent=0 // pred_region
    _
  $region33: #{tpu_custom_call.1} parent=0 // pred_fallthru
    _
  // Predicated region
  $region34: #{tpu_custom_call.1} parent=0 // pred_check
    _
  $region35: #{tpu_custom_call.1} parent=0 // pred_check_branch
    %309 = sbr.rel (0) target = $region37
  $region36: #{tpu_custom_call.1} parent=0 // pred_region
    _
  $region37: #{tpu_custom_call.1} parent=0 // pred_fallthru
    _

</llo_original>
